<compile_context>
chip_gen: v7x
topology: tpu7x:2x2x1
jax: 0.10.0
libtpu: 0.0.40
codegen_flags: <defaults>
</compile_context>

<pallas_src>
import jax
import jax.numpy as jnp
from jax.experimental import pallas as pl
from jax.experimental.pallas import tpu as pltpu

_LANE = 128     # lane width (last dim) — pad feature dims to this
_SUBLANE = 8    # f32 sublane — batch tile must be a multiple of this


def _round_up(n: int, m: int) -> int:
    return ((n + m - 1) // m) * m


def _make_mlp_kernel(num_hidden: int, linear_skip: bool):
    """Builds a fused MLP kernel. Hidden layers are unrolled at trace time."""

    def kernel(*refs):
        out_ref = refs[-1]
        in_refs = refs[:-1]

        x = in_refs[0][...]                       # (TILE_B, P_in) f32, zero-padded
        idx = 1
        h = x
        # EncBlock stack: Linear -> ReLU (-> Dropout == identity in eval)
        for _ in range(num_hidden):
            w = in_refs[idx][...]                 # (P_prev, P_out)
            b = in_refs[idx + 1][...]             # (1, P_out)
            idx += 2
            h = jnp.dot(h, w, preferred_element_type=jnp.float32) + b
            h = jnp.maximum(h, 0.0)

        # Final Linear (out_features == 1): VPU multiply + lane reduce instead of
        # an N=1 MXU matmul. Optional linear skip handled via split weight.
        wf_hid = in_refs[idx][...]                # (1, P_hlast)
        idx += 1
        out = jnp.sum(h * wf_hid, axis=-1, keepdims=True)
        if linear_skip:
            wf_x = in_refs[idx][...]              # (1, P_in)
            idx += 1
            out = out + jnp.sum(x * wf_x, axis=-1, keepdims=True)
        bf_ref = in_refs[idx]                     # (1, 1) f32 in SMEM
        out_ref[...] = out + bf_ref[0, 0]

    return kernel


def torch_neural_net_forward(x, hidden_params, final_w, final_b, *, linear_skip,
                             tile_b=None):
    """Pallas wrapper reproducing TorchNeuralNet.forward (eval mode).

    Args:
      x: (B, in_size) float32
      hidden_params: list of (W_i, b_i) with W_i shaped (d_in, d_out), b_i (d_out,)
      final_w: (out_size, 1) where out_size = H_last + in_size if linear_skip else H_last
      final_b: (1,) float32
      linear_skip: bool
      tile_b: optional batch tile (rounded up to a multiple of 8)
    Returns:
      (B, 1) float32
    """
    B, in_size = x.shape
    h_last = hidden_params[-1][0].shape[1]

    # ---- batch tiling ------------------------------------------------------
    if tile_b is None:
        # Modest default: plenty to fill the MXU M dim, far below even v7x's
        # scoped-VMEM budget (tile_b * 128 lanes * 4 B * 2 bufs is < 1 MiB).
        tile_b = min(512, _round_up(B, _SUBLANE))
    tile_b = max(_SUBLANE, _round_up(tile_b, _SUBLANE))
    num_tiles = pl.cdiv(B, tile_b)
    b_pad = num_tiles * tile_b

    # ---- pad features to full 128-lane vregs (zero padding is exact) --------
    p_in = _round_up(in_size, _LANE)
    x_p = jnp.pad(x, ((0, b_pad - B), (0, p_in - in_size)))

    inputs = [x_p]
    in_specs = [pl.BlockSpec((tile_b, p_in), lambda i: (i, 0))]

    prev_p = p_in
    for w, b in hidden_params:
        d_in, d_out = w.shape
        p_out = _round_up(d_out, _LANE)
        w_p = jnp.pad(w, ((0, prev_p - d_in), (0, p_out - d_out)))
        b_p = jnp.pad(b.reshape(1, -1), ((0, 0), (0, p_out - d_out)))
        inputs.append(w_p)
        inputs.append(b_p)
        # Constant index maps -> weights stay resident in VMEM across grid steps.
        in_specs.append(pl.BlockSpec((prev_p, p_out), lambda i: (0, 0)))
        in_specs.append(pl.BlockSpec((1, p_out), lambda i: (0, 0)))
        prev_p = p_out

    p_hlast = prev_p
    if linear_skip:
        wf_hid = jnp.pad(final_w[:h_last, 0].reshape(1, -1),
                         ((0, 0), (0, p_hlast - h_last)))
        wf_x = jnp.pad(final_w[h_last:, 0].reshape(1, -1),
                       ((0, 0), (0, p_in - in_size)))
        inputs.append(wf_hid)
        inputs.append(wf_x)
        in_specs.append(pl.BlockSpec((1, p_hlast), lambda i: (0, 0)))
        in_specs.append(pl.BlockSpec((1, p_in), lambda i: (0, 0)))
    else:
        wf_hid = jnp.pad(final_w[:, 0].reshape(1, -1),
                         ((0, 0), (0, p_hlast - h_last)))
        inputs.append(wf_hid)
        in_specs.append(pl.BlockSpec((1, p_hlast), lambda i: (0, 0)))

    # Scalar final bias lives in SMEM (no VMEM pipeline buffer for one scalar).
    inputs.append(final_b.reshape(1, 1).astype(jnp.float32))
    in_specs.append(pl.BlockSpec(memory_space=pltpu.MemorySpace.SMEM))

    out_spec = pl.BlockSpec((tile_b, 1), lambda i: (i, 0))

    kernel = _make_mlp_kernel(len(hidden_params), linear_skip)

    out_padded = pl.pallas_call(
        kernel,
        out_shape=jax.ShapeDtypeStruct((b_pad, 1), jnp.float32),
        grid=(num_tiles,),
        in_specs=in_specs,
        out_specs=out_spec,
        compiler_params=pltpu.CompilerParams(
            # Batch tiles are independent -> shard across TensorCores on v7x.
            dimension_semantics=("parallel",),
        ),
    )(*inputs)

    return out_padded[:B]


def _reference_forward(x, hidden_params, final_w, final_b, *, linear_skip):
    h = x
    for w, b in hidden_params:
        h = jnp.maximum(h @ w + b, 0.0)
    if linear_skip:
        h = jnp.concatenate([h, x], axis=1)
    return h @ final_w + final_b


def _make_params(key, in_size, hidden_sizes, linear_skip):
    keys = jax.random.split(key, 2 * (len(hidden_sizes) + 1))
    sizes = [in_size] + list(hidden_sizes)
    hidden_params = []
    k_i = 0
    for i in range(len(sizes) - 1):
        d_in, d_out = sizes[i], sizes[i + 1]
        bound = 1.0 / jnp.sqrt(d_in)
        w = jax.random.uniform(keys[k_i], (d_in, d_out), jnp.float32, -bound, bound)
        b = jax.random.uniform(keys[k_i + 1], (d_out,), jnp.float32, -bound, bound)
        hidden_params.append((w, b))
        k_i += 2
    out_in = sizes[-1] + in_size if linear_skip else sizes[-1]
    bound = 1.0 / jnp.sqrt(out_in)
    final_w = jax.random.uniform(keys[k_i], (out_in, 1), jnp.float32, -bound, bound)
    final_b = jax.random.uniform(keys[k_i + 1], (1,), jnp.float32, -bound, bound)
    return hidden_params, final_w, final_b


if __name__ == "__main__":
    # Module config: in_size=32, hidden_sizes=[64, 32], dropout=0.1 (identity in eval)
    in_size = 32
    hidden_sizes = [64, 32]
    batch = 16

    key = jax.random.PRNGKey(0)
    k_params, k_params2, k_x = jax.random.split(key, 3)
    x = jax.random.normal(k_x, (batch, in_size), jnp.float32)

    # linear_skip = True (tile_b=8 -> grid of 2 parallel batch tiles)
    hp, fw, fb = _make_params(k_params, in_size, hidden_sizes, linear_skip=True)
    out = torch_neural_net_forward(x, hp, fw, fb, linear_skip=True, tile_b=8)
    out = jax.block_until_ready(out)
    ref = _reference_forward(x, hp, fw, fb, linear_skip=True)
    assert out.shape == (batch, 1), out.shape
    assert jnp.allclose(out, ref, atol=1e-4, rtol=1e-4), "mismatch (linear_skip=True)"

    # linear_skip = False path
    hp2, fw2, fb2 = _make_params(k_params2, in_size, hidden_sizes, linear_skip=False)
    out2 = torch_neural_net_forward(x, hp2, fw2, fb2, linear_skip=False, tile_b=8)
    out2 = jax.block_until_ready(out2)
    ref2 = _reference_forward(x, hp2, fw2, fb2, linear_skip=False)
    assert out2.shape == (batch, 1), out2.shape
    assert jnp.allclose(out2, ref2, atol=1e-4, rtol=1e-4), "mismatch (linear_skip=False)"

    print("KERNEL_OK")
</pallas_src>

<mosaic_0001>
module attributes {stable_mosaic.version = 11 : i64} {
  func.func @kernel(%arg0: i32, %arg1: memref<8x128xf32, #tpu.memory_space<vmem>>, %arg2: memref<128x128xf32, #tpu.memory_space<vmem>>, %arg3: memref<1x128xf32, #tpu.memory_space<vmem>>, %arg4: memref<128x128xf32, #tpu.memory_space<vmem>>, %arg5: memref<1x128xf32, #tpu.memory_space<vmem>>, %arg6: memref<1x128xf32, #tpu.memory_space<vmem>>, %arg7: memref<1x128xf32, #tpu.memory_space<vmem>>, %arg8: memref<1x1xf32, #tpu.memory_space<smem>>, %arg9: memref<8x1xf32, #tpu.memory_space<vmem>>) attributes {dimension_semantics = [#tpu.dimension_semantics<parallel>], iteration_bounds = array<i64: 2>, scalar_prefetch = 0 : i64, scratch_operands = 0 : i64, tpu.core_type = #tpu.core_type<tc>, window_params = [{transform_indices = @transform_0, window_bounds = array<i64: 8, 128>}, {pipeline_mode = #tpu.pipeline_mode<synchronous>, transform_indices = @transform_1, window_bounds = array<i64: 128, 128>}, {pipeline_mode = #tpu.pipeline_mode<synchronous>, transform_indices = @transform_2, window_bounds = array<i64: 1, 128>}, {pipeline_mode = #tpu.pipeline_mode<synchronous>, transform_indices = @transform_3, window_bounds = array<i64: 128, 128>}, {pipeline_mode = #tpu.pipeline_mode<synchronous>, transform_indices = @transform_4, window_bounds = array<i64: 1, 128>}, {pipeline_mode = #tpu.pipeline_mode<synchronous>, transform_indices = @transform_5, window_bounds = array<i64: 1, 128>}, {pipeline_mode = #tpu.pipeline_mode<synchronous>, transform_indices = @transform_6, window_bounds = array<i64: 1, 128>}, {transform_indices = @transform_7, window_bounds = array<i64: 1, 1>}, {transform_indices = @transform_8, window_bounds = array<i64: 8, 1>}]} {
    %c0 = arith.constant 0 : index
    %c0_0 = arith.constant 0 : index
    %0 = vector.load %arg1[%c0, %c0_0] : memref<8x128xf32, #tpu.memory_space<vmem>>, vector<8x128xf32>
    %c0_1 = arith.constant 0 : index
    %c0_2 = arith.constant 0 : index
    %1 = vector.load %arg2[%c0_1, %c0_2] : memref<128x128xf32, #tpu.memory_space<vmem>>, vector<128x128xf32>
    %c0_3 = arith.constant 0 : index
    %c0_4 = arith.constant 0 : index
    %2 = vector.load %arg3[%c0_3, %c0_4] : memref<1x128xf32, #tpu.memory_space<vmem>>, vector<1x128xf32>
    %cst = arith.constant dense<0.000000e+00> : vector<8x128xf32>
    %3 = tpu.matmul %0, %1, %cst {dimension_numbers = #tpu.dot_dimension_numbers<[1], [0], [0], [1], [0, 0, 1, 1], [], []>} : vector<8x128xf32>, vector<128x128xf32>, vector<8x128xf32> -> vector<8x128xf32>
    %4 = vector.broadcast %2 : vector<1x128xf32> to vector<8x128xf32>
    %5 = arith.addf %3, %4 : vector<8x128xf32>
    %cst_5 = arith.constant 0.000000e+00 : f32
    %6 = vector.broadcast %cst_5 : f32 to vector<8x128xf32>
    %7 = arith.maximumf %5, %6 : vector<8x128xf32>
    %c0_6 = arith.constant 0 : index
    %c0_7 = arith.constant 0 : index
    %8 = vector.load %arg4[%c0_6, %c0_7] : memref<128x128xf32, #tpu.memory_space<vmem>>, vector<128x128xf32>
    %c0_8 = arith.constant 0 : index
    %c0_9 = arith.constant 0 : index
    %9 = vector.load %arg5[%c0_8, %c0_9] : memref<1x128xf32, #tpu.memory_space<vmem>>, vector<1x128xf32>
    %cst_10 = arith.constant dense<0.000000e+00> : vector<8x128xf32>
    %10 = tpu.matmul %7, %8, %cst_10 {dimension_numbers = #tpu.dot_dimension_numbers<[1], [0], [0], [1], [0, 0, 1, 1], [], []>} : vector<8x128xf32>, vector<128x128xf32>, vector<8x128xf32> -> vector<8x128xf32>
    %11 = vector.broadcast %9 : vector<1x128xf32> to vector<8x128xf32>
    %12 = arith.addf %10, %11 : vector<8x128xf32>
    %cst_11 = arith.constant 0.000000e+00 : f32
    %13 = vector.broadcast %cst_11 : f32 to vector<8x128xf32>
    %14 = arith.maximumf %12, %13 : vector<8x128xf32>
    %c0_12 = arith.constant 0 : index
    %c0_13 = arith.constant 0 : index
    %15 = vector.load %arg6[%c0_12, %c0_13] : memref<1x128xf32, #tpu.memory_space<vmem>>, vector<1x128xf32>
    %16 = vector.broadcast %15 : vector<1x128xf32> to vector<8x128xf32>
    %17 = arith.mulf %14, %16 : vector<8x128xf32>
    %cst_14 = arith.constant dense<0.000000e+00> : vector<8xf32>
    %18 = vector.multi_reduction <add>, %17, %cst_14 [1] : vector<8x128xf32> to vector<8xf32>
    %19 = vector.shape_cast %18 : vector<8xf32> to vector<8x1xf32>
    %c0_15 = arith.constant 0 : index
    %c0_16 = arith.constant 0 : index
    %20 = vector.load %arg7[%c0_15, %c0_16] : memref<1x128xf32, #tpu.memory_space<vmem>>, vector<1x128xf32>
    %21 = vector.broadcast %20 : vector<1x128xf32> to vector<8x128xf32>
    %22 = arith.mulf %0, %21 : vector<8x128xf32>
    %cst_17 = arith.constant dense<0.000000e+00> : vector<8xf32>
    %23 = vector.multi_reduction <add>, %22, %cst_17 [1] : vector<8x128xf32> to vector<8xf32>
    %24 = vector.shape_cast %23 : vector<8xf32> to vector<8x1xf32>
    %25 = arith.addf %19, %24 : vector<8x1xf32>
    %c0_18 = arith.constant 0 : index
    %c0_19 = arith.constant 0 : index
    %26 = memref.load %arg8[%c0_18, %c0_19] : memref<1x1xf32, #tpu.memory_space<smem>>
    %27 = vector.broadcast %26 : f32 to vector<8x1xf32>
    %28 = arith.addf %25, %27 : vector<8x1xf32>
    %c0_20 = arith.constant 0 : index
    %c0_21 = arith.constant 0 : index
    %29 = vector.load %arg9[%c0_20, %c0_21] : memref<8x1xf32, #tpu.memory_space<vmem>>, vector<8x1xf32>
    tpu.vector_store %arg9[%c0_20, %c0_21], %28 {strides = array<i32>} : memref<8x1xf32, #tpu.memory_space<vmem>>, vector<8x1xf32>,
    return
  }
  func.func @transform_0(%arg0: i32) -> (i32, i32) {
    %c0_i32 = arith.constant 0 : i32
    %c0_i32_0 = arith.constant 0 : i32
    return %arg0, %c0_i32 : i32, i32
  }
  func.func @transform_1(%arg0: i32) -> (i32, i32) {
    %c0_i32 = arith.constant 0 : i32
    %c0_i32_0 = arith.constant 0 : i32
    %c0_i32_1 = arith.constant 0 : i32
    return %c0_i32, %c0_i32_0 : i32, i32
  }
  func.func @transform_2(%arg0: i32) -> (i32, i32) {
    %c0_i32 = arith.constant 0 : i32
    %c0_i32_0 = arith.constant 0 : i32
    %c0_i32_1 = arith.constant 0 : i32
    return %c0_i32, %c0_i32_0 : i32, i32
  }
  func.func @transform_3(%arg0: i32) -> (i32, i32) {
    %c0_i32 = arith.constant 0 : i32
    %c0_i32_0 = arith.constant 0 : i32
    %c0_i32_1 = arith.constant 0 : i32
    return %c0_i32, %c0_i32_0 : i32, i32
  }
  func.func @transform_4(%arg0: i32) -> (i32, i32) {
    %c0_i32 = arith.constant 0 : i32
    %c0_i32_0 = arith.constant 0 : i32
    %c0_i32_1 = arith.constant 0 : i32
    return %c0_i32, %c0_i32_0 : i32, i32
  }
  func.func @transform_5(%arg0: i32) -> (i32, i32) {
    %c0_i32 = arith.constant 0 : i32
    %c0_i32_0 = arith.constant 0 : i32
    %c0_i32_1 = arith.constant 0 : i32
    return %c0_i32, %c0_i32_0 : i32, i32
  }
  func.func @transform_6(%arg0: i32) -> (i32, i32) {
    %c0_i32 = arith.constant 0 : i32
    %c0_i32_0 = arith.constant 0 : i32
    %c0_i32_1 = arith.constant 0 : i32
    return %c0_i32, %c0_i32_0 : i32, i32
  }
  func.func @transform_7(%arg0: i32) -> (i32, i32) {
    %c0_i32 = arith.constant 0 : i32
    %c0_i32_0 = arith.constant 0 : i32
    %c0_i32_1 = arith.constant 0 : i32
    return %c0_i32, %c0_i32_0 : i32, i32
  }
  func.func @transform_8(%arg0: i32) -> (i32, i32) {
    %c0_i32 = arith.constant 0 : i32
    %c0_i32_0 = arith.constant 0 : i32
    return %arg0, %c0_i32 : i32, i32
  }
}

</mosaic_0001>

<llo_original>
// kernel: tpu_custom_call.1
$region0: #{tpu_custom_call.1}
  #allocation0 [shape = 'u32[]', space=smem, size = 0x4, offset = 0x4, fixed_abs, tag = 'smem constant byte address 0x4 - core index']
  #allocation1 [shape = 'u32[144,128]{1,0:T(1,128)}', space=vmem, size = 0x12000, scoped, tag = 'internal scratch']
  #allocation2 [shape = 'f32[1,1]{1,0:T(1,128)S(6)}', space=smem, size = 0x200, scoped, tag = 'scoped memory for tpu_custom_call.1']
  %s0 = inlined_call_operand.hbm [shape: f32[16,128], index: 0, kind: input, shape index: {}]
  %s1 = inlined_call_operand.hbm [shape: f32[128,128], index: 1, kind: input, shape index: {}]
  %s2 = inlined_call_operand.vmem [shape: f32[1,128], index: 2, kind: input, shape index: {}]
  %s3 = inlined_call_operand.hbm [shape: f32[128,128], index: 3, kind: input, shape index: {}]
  %s4 = inlined_call_operand.vmem [shape: f32[1,128], index: 4, kind: input, shape index: {}]
  %s5 = inlined_call_operand.vmem [shape: f32[1,128], index: 5, kind: input, shape index: {}]
  %s6 = inlined_call_operand.vmem [shape: f32[1,128], index: 6, kind: input, shape index: {}]
  %s7 = inlined_call_operand.<no memory space> [shape: f32[1,1], index: 7, kind: input, shape index: {}]
  %s8 = inlined_call_operand.vmem [shape: f32[16,1], index: 8, kind: output, shape index: {}]
  %s9 = sld [smem:[#allocation0]]
  $region77: #{tpu_custom_call.1} parent=0
    _
  %s11 = ssub.s32 1, %s9
  %s12 = scalar_select 0, %s11, %s9
  %13 = sst [smem:[#allocation2]] %s7
  $region1: #{tpu_custom_call.1} parent=0
    #allocation3 [shape = 'u8[8192]{0}', space=vmem, size = 0x2000, scoped, tag = 'input window, operand 0']
    #allocation4 [shape = 's32[2]{0}', space=sflag, size = 0x8, scoped, tag = 'scoped memory for tpu_custom_call.1']
    #allocation5 [shape = 'u8[65536]{0}', space=vmem, size = 0x10000, scoped, tag = 'input window, operand 1, single buffered']
    #allocation6 [shape = 's32[1]{0}', space=sflag, size = 0x4, scoped, tag = 'scoped memory for tpu_custom_call.1']
    #allocation7 [shape = 'u8[65536]{0}', space=vmem, size = 0x10000, scoped, tag = 'input window, operand 3, single buffered']
    %14 = vsyncpa [#allocation4], 0
    %s15 = scalar_lea.sflag [#allocation4], 1
    %16 = vsyncpa %s15, 0
    %17 = vsyncpa [#allocation6], 0
    loop: start=0, step=1, limit=4
    $region2: #{tpu_custom_call.1} parent=1 // loop_pre_header
      _
    $region3: #{tpu_custom_call.1} parent=1 // loop_header
      %s19 = sphi 0, %s23
      %p20 = scmp.ge.s32.totalorder %s19, 4
      %s29 = sphi 0, %s31
      %s32 = sphi 0, %s29
      %s33 = sphi 0, %s32
      %s49 = sphi 0, %s33
      %s53 = sphi 0, %s53
      %s55 = sphi 0, %s53
      %s56 = sphi 0, %s55
      %s70 = sphi 0, %s56
      %s74 = sphi 0, %s74
      %s76 = sphi 0, %s74
      %s77 = sphi 0, %s76
      %s91 = sphi 0, %s77
      %s95 = sphi 0, %s95
      %s97 = sphi 0, %s95
      %s98 = sphi 0, %s97
      %s112 = sphi 0, %s98
      %s116 = sphi 0, %s116
      %s118 = sphi 0, %s116
      %s119 = sphi 0, %s118
      %s133 = sphi 0, %s119
      %s137 = sphi 0, %s137
      %s139 = sphi 0, %s137
      %s140 = sphi 0, %s139
      %s154 = sphi 0, %s140
      %s158 = sphi 0, %s158
      %s160 = sphi 0, %s158
      %s161 = sphi 0, %s160
      %s175 = sphi 0, %s161
      %s179 = sphi 0, %s179
      %s181 = sphi 0, %s179
      %s182 = sphi 0, %s181
      %s196 = sphi 0, %s182
      %s202 = sphi 0, %s204
      %s205 = sphi 0, %s202
      %s206 = sphi 0, %s205
      %s222 = sphi 0, %s206
    $region4: #{tpu_custom_call.1} parent=1 // loop_header_branch
      %22 = sbr.rel (%p20) target = $region8
    $region5: #{tpu_custom_call.1} parent=1 // loop_body
      %s24 = ssub.s32 %s19, 1
      %s25 = ssub.s32 %s19, 2
      %s26 = sadd.s32 %s19, 1
      %s27 = ssub.s32 %s19, %s26
      %p28 = scmp.eq.s32.totalorder %s27, 0
      %s30 = sadd.s32 %s29, 1
      %s31 = scalar_select %p28, %s29, %s30
      %p34 = pneg %p28
      %p35 = scmp.eq.s32.totalorder %s19, 1
      %p36 = por %p34, %p35
      %p37 = scmp.ne.s32.totalorder %s29, %s32
      %p38 = scmp.eq.s32.totalorder %s19, 0
      %p39 = por %p37, %p38
      %p40 = scmp.ne.s32.totalorder %s29, %s32
      %p41 = scmp.eq.s32.totalorder %s24, 1
      %p42 = por %p40, %p41
      %p43 = scmp.ne.s32.totalorder %s32, %s33
      %p44 = scmp.eq.s32.totalorder %s24, 0
      %p45 = por %p43, %p44
      %p46 = scmp.ne.s32.totalorder %s32, %s33
      %p47 = scmp.eq.s32.totalorder %s25, 1
      %p48 = por %p46, %p47
      %p50 = scmp.ne.s32.totalorder %s33, %s49
      %p51 = scmp.eq.s32.totalorder %s25, 0
      %p52 = por %p50, %p51
      %s54 = sadd.s32 %s53, 1
      %p57 = scmp.eq.s32.totalorder %s19, 1
      %p58 = scmp.ne.s32.totalorder %s53, %s55
      %p59 = scmp.eq.s32.totalorder %s19, 0
      %p60 = por %p58, %p59
      %p61 = scmp.ne.s32.totalorder %s53, %s55
      %p62 = scmp.eq.s32.totalorder %s24, 1
      %p63 = por %p61, %p62
      %p64 = scmp.ne.s32.totalorder %s55, %s56
      %p65 = scmp.eq.s32.totalorder %s24, 0
      %p66 = por %p64, %p65
      %p67 = scmp.ne.s32.totalorder %s55, %s56
      %p68 = scmp.eq.s32.totalorder %s25, 1
      %p69 = por %p67, %p68
      %p71 = scmp.ne.s32.totalorder %s56, %s70
      %p72 = scmp.eq.s32.totalorder %s25, 0
      %p73 = por %p71, %p72
      %s75 = sadd.s32 %s74, 1
      %p78 = scmp.eq.s32.totalorder %s19, 1
      %p79 = scmp.ne.s32.totalorder %s74, %s76
      %p80 = scmp.eq.s32.totalorder %s19, 0
      %p81 = por %p79, %p80
      %p82 = scmp.ne.s32.totalorder %s74, %s76
      %p83 = scmp.eq.s32.totalorder %s24, 1
      %p84 = por %p82, %p83
      %p85 = scmp.ne.s32.totalorder %s76, %s77
      %p86 = scmp.eq.s32.totalorder %s24, 0
      %p87 = por %p85, %p86
      %p88 = scmp.ne.s32.totalorder %s76, %s77
      %p89 = scmp.eq.s32.totalorder %s25, 1
      %p90 = por %p88, %p89
      %p92 = scmp.ne.s32.totalorder %s77, %s91
      %p93 = scmp.eq.s32.totalorder %s25, 0
      %p94 = por %p92, %p93
      %s96 = sadd.s32 %s95, 1
      %p99 = scmp.eq.s32.totalorder %s19, 1
      %p100 = scmp.ne.s32.totalorder %s95, %s97
      %p101 = scmp.eq.s32.totalorder %s19, 0
      %p102 = por %p100, %p101
      %p103 = scmp.ne.s32.totalorder %s95, %s97
      %p104 = scmp.eq.s32.totalorder %s24, 1
      %p105 = por %p103, %p104
      %p106 = scmp.ne.s32.totalorder %s97, %s98
      %p107 = scmp.eq.s32.totalorder %s24, 0
      %p108 = por %p106, %p107
      %p109 = scmp.ne.s32.totalorder %s97, %s98
      %p110 = scmp.eq.s32.totalorder %s25, 1
      %p111 = por %p109, %p110
      %p113 = scmp.ne.s32.totalorder %s98, %s112
      %p114 = scmp.eq.s32.totalorder %s25, 0
      %p115 = por %p113, %p114
      %s117 = sadd.s32 %s116, 1
      %p120 = scmp.eq.s32.totalorder %s19, 1
      %p121 = scmp.ne.s32.totalorder %s116, %s118
      %p122 = scmp.eq.s32.totalorder %s19, 0
      %p123 = por %p121, %p122
      %p124 = scmp.ne.s32.totalorder %s116, %s118
      %p125 = scmp.eq.s32.totalorder %s24, 1
      %p126 = por %p124, %p125
      %p127 = scmp.ne.s32.totalorder %s118, %s119
      %p128 = scmp.eq.s32.totalorder %s24, 0
      %p129 = por %p127, %p128
      %p130 = scmp.ne.s32.totalorder %s118, %s119
      %p131 = scmp.eq.s32.totalorder %s25, 1
      %p132 = por %p130, %p131
      %p134 = scmp.ne.s32.totalorder %s119, %s133
      %p135 = scmp.eq.s32.totalorder %s25, 0
      %p136 = por %p134, %p135
      %s138 = sadd.s32 %s137, 1
      %p141 = scmp.eq.s32.totalorder %s19, 1
      %p142 = scmp.ne.s32.totalorder %s137, %s139
      %p143 = scmp.eq.s32.totalorder %s19, 0
      %p144 = por %p142, %p143
      %p145 = scmp.ne.s32.totalorder %s137, %s139
      %p146 = scmp.eq.s32.totalorder %s24, 1
      %p147 = por %p145, %p146
      %p148 = scmp.ne.s32.totalorder %s139, %s140
      %p149 = scmp.eq.s32.totalorder %s24, 0
      %p150 = por %p148, %p149
      %p151 = scmp.ne.s32.totalorder %s139, %s140
      %p152 = scmp.eq.s32.totalorder %s25, 1
      %p153 = por %p151, %p152
      %p155 = scmp.ne.s32.totalorder %s140, %s154
      %p156 = scmp.eq.s32.totalorder %s25, 0
      %p157 = por %p155, %p156
      %s159 = sadd.s32 %s158, 1
      %p162 = scmp.eq.s32.totalorder %s19, 1
      %p163 = scmp.ne.s32.totalorder %s158, %s160
      %p164 = scmp.eq.s32.totalorder %s19, 0
      %p165 = por %p163, %p164
      %p166 = scmp.ne.s32.totalorder %s158, %s160
      %p167 = scmp.eq.s32.totalorder %s24, 1
      %p168 = por %p166, %p167
      %p169 = scmp.ne.s32.totalorder %s160, %s161
      %p170 = scmp.eq.s32.totalorder %s24, 0
      %p171 = por %p169, %p170
      %p172 = scmp.ne.s32.totalorder %s160, %s161
      %p173 = scmp.eq.s32.totalorder %s25, 1
      %p174 = por %p172, %p173
      %p176 = scmp.ne.s32.totalorder %s161, %s175
      %p177 = scmp.eq.s32.totalorder %s25, 0
      %p178 = por %p176, %p177
      %s180 = sadd.s32 %s179, 1
      %p183 = scmp.eq.s32.totalorder %s19, 1
      %p184 = scmp.ne.s32.totalorder %s179, %s181
      %p185 = scmp.eq.s32.totalorder %s19, 0
      %p186 = por %p184, %p185
      %p187 = scmp.ne.s32.totalorder %s179, %s181
      %p188 = scmp.eq.s32.totalorder %s24, 1
      %p189 = por %p187, %p188
      %p190 = scmp.ne.s32.totalorder %s181, %s182
      %p191 = scmp.eq.s32.totalorder %s24, 0
      %p192 = por %p190, %p191
      %p193 = scmp.ne.s32.totalorder %s181, %s182
      %p194 = scmp.eq.s32.totalorder %s25, 1
      %p195 = por %p193, %p194
      %p197 = scmp.ne.s32.totalorder %s182, %s196
      %p198 = scmp.eq.s32.totalorder %s25, 0
      %p199 = por %p197, %p198
      %s200 = ssub.s32 %s19, %s26
      %p201 = scmp.eq.s32.totalorder %s200, 0
      %s203 = sadd.s32 %s202, 1
      %s204 = scalar_select %p201, %s202, %s203
      %p207 = pneg %p201
      %p208 = scmp.eq.s32.totalorder %s19, 1
      %p209 = por %p207, %p208
      %p210 = scmp.ne.s32.totalorder %s202, %s205
      %p211 = scmp.eq.s32.totalorder %s19, 0
      %p212 = por %p210, %p211
      %p213 = scmp.ne.s32.totalorder %s202, %s205
      %p214 = scmp.eq.s32.totalorder %s24, 1
      %p215 = por %p213, %p214
      %p216 = scmp.ne.s32.totalorder %s205, %s206
      %p217 = scmp.eq.s32.totalorder %s24, 0
      %p218 = por %p216, %p217
      %p219 = scmp.ne.s32.totalorder %s205, %s206
      %p220 = scmp.eq.s32.totalorder %s25, 1
      %p221 = por %p219, %p220
      %p223 = scmp.ne.s32.totalorder %s206, %s222
      %p224 = scmp.eq.s32.totalorder %s25, 0
      %p225 = por %p223, %p224
      %p226 = scmp.le.s32.totalorder 1, %s19
      %p227 = scmp.lt.s32.totalorder %s19, 3
      %p228 = pnand %p226, %p227
      %p229 = pneg %p228
      // Predicated region
      $region9: #{tpu_custom_call.1} parent=5 // pred_check
        _
      $region10: #{tpu_custom_call.1} parent=5 // pred_check_branch
        %231 = sbr.rel (%p228) target = $region12
      $region11: #{tpu_custom_call.1} parent=5 // pred_region
        %s232 = ssub.s32 %s19, 1
        // Predicated region
        $region13: #{tpu_custom_call.1} parent=11 // pred_check
          %p233 = pneg %p66
        $region14: #{tpu_custom_call.1} parent=11 // pred_check_branch
          %235 = sbr.rel (%p233) target = $region16
        $region15: #{tpu_custom_call.1} parent=11 // pred_region
          %s237 = ssub.s32 2048, 2048
          %238 = vsyncadd [#allocation6], %s237
          %s239 = sshll.u32 [#allocation5], 4
          %s240 = int_to_ptr.vmem [resolvable:$true] %s239
          %245 = dma.hbm_to_vmem [thread:$0]  %s1, 2048, %s240, [#allocation6], 128, 128, 8
        $region16: #{tpu_custom_call.1} parent=11 // pred_fallthru
          _
        // Predicated region
        $region17: #{tpu_custom_call.1} parent=11 // pred_check
          %p246 = pneg %p87
        $region18: #{tpu_custom_call.1} parent=11 // pred_check_branch
          %248 = sbr.rel (%p246) target = $region20
        $region19: #{tpu_custom_call.1} parent=11 // pred_region
          _
        $region20: #{tpu_custom_call.1} parent=11 // pred_fallthru
          _
        // Predicated region
        $region21: #{tpu_custom_call.1} parent=11 // pred_check
          %p249 = pneg %p108
        $region22: #{tpu_custom_call.1} parent=11 // pred_check_branch
          %251 = sbr.rel (%p249) target = $region24
        $region23: #{tpu_custom_call.1} parent=11 // pred_region
          %s253 = ssub.s32 2048, 2048
          %254 = vsyncadd [#allocation6], %s253
          %s255 = sshll.u32 [#allocation7], 4
          %s256 = int_to_ptr.vmem [resolvable:$true] %s255
          %261 = dma.hbm_to_vmem [thread:$0]  %s3, 2048, %s256, [#allocation6], 128, 128, 8
        $region24: #{tpu_custom_call.1} parent=11 // pred_fallthru
          _
        // Predicated region
        $region25: #{tpu_custom_call.1} parent=11 // pred_check
          %p262 = pneg %p129
        $region26: #{tpu_custom_call.1} parent=11 // pred_check_branch
          %264 = sbr.rel (%p262) target = $region28
        $region27: #{tpu_custom_call.1} parent=11 // pred_region
          _
        $region28: #{tpu_custom_call.1} parent=11 // pred_fallthru
          _
        // Predicated region
        $region29: #{tpu_custom_call.1} parent=11 // pred_check
          %p265 = pneg %p150
        $region30: #{tpu_custom_call.1} parent=11 // pred_check_branch
          %267 = sbr.rel (%p265) target = $region32
        $region31: #{tpu_custom_call.1} parent=11 // pred_region
          _
        $region32: #{tpu_custom_call.1} parent=11 // pred_fallthru
          _
        // Predicated region
        $region33: #{tpu_custom_call.1} parent=11 // pred_check
          %p268 = pneg %p171
        $region34: #{tpu_custom_call.1} parent=11 // pred_check_branch
          %270 = sbr.rel (%p268) target = $region36
        $region35: #{tpu_custom_call.1} parent=11 // pred_region
          _
        $region36: #{tpu_custom_call.1} parent=11 // pred_fallthru
          _
        // Predicated region
        $region37: #{tpu_custom_call.1} parent=11 // pred_check
          %p271 = pneg %p192
        $region38: #{tpu_custom_call.1} parent=11 // pred_check_branch
          %273 = sbr.rel (%p271) target = $region40
        $region39: #{tpu_custom_call.1} parent=11 // pred_region
          _
        $region40: #{tpu_custom_call.1} parent=11 // pred_fallthru
          _
      $region12: #{tpu_custom_call.1} parent=5 // pred_fallthru
        _
      %p274 = scmp.lt.s32.totalorder %s19, 2
      // Predicated region
      $region41: #{tpu_custom_call.1} parent=5 // pred_check
        %p275 = pneg %p274
      $region42: #{tpu_custom_call.1} parent=5 // pred_check_branch
        %277 = sbr.rel (%p275) target = $region44
      $region43: #{tpu_custom_call.1} parent=5 // pred_region
        // Predicated region
        $region45: #{tpu_custom_call.1} parent=43 // pred_check
          %p278 = pneg %p39
        $region46: #{tpu_custom_call.1} parent=43 // pred_check_branch
          %280 = sbr.rel (%p278) target = $region48
        $region47: #{tpu_custom_call.1} parent=43 // pred_region
          %s281 = sand.u32 %s29, 1
          %s282 = scalar_lea.sflag [#allocation4], %s281
          %s283 = sand.u32 %s29, 1
          %s284 = smul.addr %s283, 8
          %s285 = scalar_lea.vmem [#allocation3], %s284
          %s287 = ssub.s32 128, 128
          %288 = vsyncadd %s282, %s287
          %s289 = smul.addr %s19, 128
          %s290 = scalar_lea.hbm %s0, %s289
          %s292 = sshll.u32 %s285, 4
          %s293 = int_to_ptr.vmem [resolvable:$true] %s292
          %295 = dma.hbm_to_vmem [thread:$0]  %s290, 128, %s293, %s282
        $region48: #{tpu_custom_call.1} parent=43 // pred_fallthru
          _
      $region44: #{tpu_custom_call.1} parent=5 // pred_fallthru
        _
      %p296 = scmp.le.s32.totalorder 1, %s19
      %p297 = scmp.lt.s32.totalorder %s19, 3
      %p298 = pnand %p296, %p297
      %p299 = pneg %p298
      // Predicated region
      $region49: #{tpu_custom_call.1} parent=5 // pred_check
        _
      $region50: #{tpu_custom_call.1} parent=5 // pred_check_branch
        %301 = sbr.rel (%p298) target = $region52
      $region51: #{tpu_custom_call.1} parent=5 // pred_region
        %s302 = ssub.s32 %s19, 1
        %s303 = sand.u32 %s32, 1
        %s304 = scalar_lea.sflag [#allocation4], %s303
        %s305 = sand.u32 %s32, 1
        %s306 = smul.addr %s305, 8
        %s307 = scalar_lea.vmem [#allocation3], %s306
        // Predicated region
        $region53: #{tpu_custom_call.1} parent=51 // pred_check
          %p308 = pneg %p45
        $region54: #{tpu_custom_call.1} parent=51 // pred_check_branch
          %310 = sbr.rel (%p308) target = $region56
        $region55: #{tpu_custom_call.1} parent=51 // pred_region
          %311 = dma.done %s304, 128
        $region56: #{tpu_custom_call.1} parent=51 // pred_fallthru
          _
        // Predicated region
        $region57: #{tpu_custom_call.1} parent=51 // pred_check
          %p312 = pneg %p66
        $region58: #{tpu_custom_call.1} parent=51 // pred_check_branch
          %314 = sbr.rel (%p312) target = $region60
        $region59: #{tpu_custom_call.1} parent=51 // pred_region
          %315 = dma.done [#allocation6], 2048
        $region60: #{tpu_custom_call.1} parent=51 // pred_fallthru
          _
        // Predicated region
        $region61: #{tpu_custom_call.1} parent=51 // pred_check
          %p316 = pneg %p108
        $region62: #{tpu_custom_call.1} parent=51 // pred_check_branch
          %318 = sbr.rel (%p316) target = $region64
        $region63: #{tpu_custom_call.1} parent=51 // pred_region
          %319 = dma.done [#allocation6], 2048
        $region64: #{tpu_custom_call.1} parent=51 // pred_fallthru
          _
        %s320 = sand.u32 %s32, 1
        %s321 = scalar_lea.sflag [#allocation4], %s320
        %s322 = sand.u32 %s32, 1
        %s323 = smul.addr %s322, 8
        %s324 = scalar_lea.vmem [#allocation3], %s323
        %p325 = pneg %p45
        %p326 = pneg %p42
        %p327 = pneg %p66
        %p328 = pneg %p63
        %p329 = pneg %p87
        %p330 = pneg %p84
        %p331 = pneg %p108
        %p332 = pneg %p105
        %p333 = pneg %p129
        %p334 = pneg %p126
        %p335 = pneg %p150
        %p336 = pneg %p147
        %p337 = pneg %p171
        %p338 = pneg %p168
        %p339 = pneg %p192
        %p340 = pneg %p189
        %p341 = pneg %p218
        %p342 = pneg %p215
        %p343 = scmp.lt.s32.totalorder %s24, 1
        %s344 = scalar_select %p343, %s24, 1
        %s345 = smul.addr %s344, 8
        %s346 = scalar_lea.vmem %s8, %s345
        %p347 = scmp.lt.s32.totalorder %s24, 1
        %s348 = scalar_select %p347, %s24, 1
        %s349 = smul.addr %s348, 8
        %s350 = scalar_lea.vmem %s8, %s349
        %v351 = vld [vmem:[%s307] sm:$0xff]
        %v352 = vld [vmem:[#allocation5] sm:$0xff]
        %v353 = vld [vmem:[#allocation5 + $0x8] sm:$0xff]
        %v354 = vld [vmem:[#allocation5 + $0x10] sm:$0xff]
        %v355 = vld [vmem:[#allocation5 + $0x18] sm:$0xff]
        %v356 = vld [vmem:[#allocation5 + $0x20] sm:$0xff]
        %v357 = vld [vmem:[#allocation5 + $0x28] sm:$0xff]
        %v358 = vld [vmem:[#allocation5 + $0x30] sm:$0xff]
        %v359 = vld [vmem:[#allocation5 + $0x38] sm:$0xff]
        %v360 = vld [vmem:[#allocation5 + $0x40] sm:$0xff]
        %v361 = vld [vmem:[#allocation5 + $0x48] sm:$0xff]
        %v362 = vld [vmem:[#allocation5 + $0x50] sm:$0xff]
        %v363 = vld [vmem:[#allocation5 + $0x58] sm:$0xff]
        %v364 = vld [vmem:[#allocation5 + $0x60] sm:$0xff]
        %v365 = vld [vmem:[#allocation5 + $0x68] sm:$0xff]
        %v366 = vld [vmem:[#allocation5 + $0x70] sm:$0xff]
        %v367 = vld [vmem:[#allocation5 + $0x78] sm:$0xff]
        %v368 = vld [vmem:[%s2] sm:$0x1]
        %v370 = vlaneseq
        %v371 = vshrl.u32 %v370, 7
        %v372 = vsub.s32 0, %v371
        %v373 = vrot.slane %v368, %v372
        %375 = vmatprep.subr.mxu0 0.0
        %376 = vmatpush1.msra.mxu0 %v352
        %377 = vmatprep.subr.mxu0 0.0
        %378 = vmatpush1.msra.mxu0 %v353
        %379 = vmatprep.subr.mxu0 0.0
        %380 = vmatpush1.msra.mxu0 %v354
        %381 = vmatprep.subr.mxu0 0.0
        %382 = vmatpush1.msra.mxu0 %v355
        %383 = vmatprep.subr.mxu0 0.0
        %384 = vmatpush1.msra.mxu0 %v356
        %385 = vmatprep.subr.mxu0 0.0
        %386 = vmatpush1.msra.mxu0 %v357
        %387 = vmatprep.subr.mxu0 0.0
        %388 = vmatpush1.msra.mxu0 %v358
        %389 = vmatprep.subr.mxu0 0.0
        %390 = vmatpush1.msra.mxu0 %v359
        %391 = vmatprep.subr.mxu0 0.0
        %392 = vmatpush1.msra.mxu0 %v360
        %393 = vmatprep.subr.mxu0 0.0
        %394 = vmatpush1.msra.mxu0 %v361
        %395 = vmatprep.subr.mxu0 0.0
        %396 = vmatpush1.msra.mxu0 %v362
        %397 = vmatprep.subr.mxu0 0.0
        %398 = vmatpush1.msra.mxu0 %v363
        %399 = vmatprep.subr.mxu0 0.0
        %400 = vmatpush1.msra.mxu0 %v364
        %401 = vmatprep.subr.mxu0 0.0
        %402 = vmatpush1.msra.mxu0 %v365
        %403 = vmatprep.subr.mxu0 0.0
        %404 = vmatpush1.msra.mxu0 %v366
        %405 = vmatprep.subr.mxu0 0.0
        %406 = vmatpush1.msra.mxu0 %v367
        %407 = vmatprep.subr.mxu0 0.0
        %408 = vmatpush1.msra.mxu0 0.0
        %409 = vmatprep.subr.mxu0 0.0
        %410 = vmatpush1.msra.mxu0 0.0
        %411 = vmatprep.subr.mxu0 0.0
        %412 = vmatpush1.msra.mxu0 0.0
        %413 = vmatprep.subr.mxu0 0.0
        %414 = vmatpush1.msra.mxu0 0.0
        %415 = vmatprep.subr.mxu0 0.0
        %416 = vmatpush1.msra.mxu0 0.0
        %417 = vmatprep.subr.mxu0 0.0
        %418 = vmatpush1.msra.mxu0 0.0
        %419 = vmatprep.subr.mxu0 0.0
        %420 = vmatpush1.msra.mxu0 0.0
        %421 = vmatprep.subr.mxu0 0.0
        %422 = vmatpush1.msra.mxu0 0.0
        %423 = vmatprep.subr.mxu0 0.0
        %424 = vmatpush1.msra.mxu0 0.0
        %425 = vmatprep.subr.mxu0 0.0
        %426 = vmatpush1.msra.mxu0 0.0
        %427 = vmatprep.subr.mxu0 0.0
        %428 = vmatpush1.msra.mxu0 0.0
        %429 = vmatprep.subr.mxu0 0.0
        %430 = vmatpush1.msra.mxu0 0.0
        %431 = vmatprep.subr.mxu0 0.0
        %432 = vmatpush1.msra.mxu0 0.0
        %433 = vmatprep.subr.mxu0 0.0
        %434 = vmatpush1.msra.mxu0 0.0
        %435 = vmatprep.subr.mxu0 0.0
        %436 = vmatpush1.msra.mxu0 0.0
        %437 = vmatprep.subr.mxu0 0.0
        %438 = vmatpush1.msra.mxu0 0.0
        %439 = vmatprep.mubr.f32.mxu0 0.0
        %440 = vmatmul.mubr.f32.gmra.mrb[0].mxu0 %v351
        %v441 = vpop.f32.mrb[0].mxu0
        %v442 = vadd.f32 %v373, %v441
        %v443 = vpop.f32.mrb[0].mxu0
        %444 = vdwg.mxu0
        %v445 = vmax.f32 %v442, 0.0
        %v446 = vld [vmem:[#allocation7] sm:$0xff]
        %v447 = vld [vmem:[#allocation7 + $0x8] sm:$0xff]
        %v448 = vld [vmem:[#allocation7 + $0x10] sm:$0xff]
        %v449 = vld [vmem:[#allocation7 + $0x18] sm:$0xff]
        %v450 = vld [vmem:[#allocation7 + $0x20] sm:$0xff]
        %v451 = vld [vmem:[#allocation7 + $0x28] sm:$0xff]
        %v452 = vld [vmem:[#allocation7 + $0x30] sm:$0xff]
        %v453 = vld [vmem:[#allocation7 + $0x38] sm:$0xff]
        %v454 = vld [vmem:[#allocation7 + $0x40] sm:$0xff]
        %v455 = vld [vmem:[#allocation7 + $0x48] sm:$0xff]
        %v456 = vld [vmem:[#allocation7 + $0x50] sm:$0xff]
        %v457 = vld [vmem:[#allocation7 + $0x58] sm:$0xff]
        %v458 = vld [vmem:[#allocation7 + $0x60] sm:$0xff]
        %v459 = vld [vmem:[#allocation7 + $0x68] sm:$0xff]
        %v460 = vld [vmem:[#allocation7 + $0x70] sm:$0xff]
        %v461 = vld [vmem:[#allocation7 + $0x78] sm:$0xff]
        %v462 = vld [vmem:[%s4] sm:$0x1]
        %v464 = vlaneseq
        %v465 = vshrl.u32 %v464, 7
        %v466 = vsub.s32 0, %v465
        %v467 = vrot.slane %v462, %v466
        %469 = vmatprep.subr.mxu0 0.0
        %470 = vmatpush1.msra.mxu0 %v446
        %471 = vmatprep.subr.mxu0 0.0
        %472 = vmatpush1.msra.mxu0 %v447
        %473 = vmatprep.subr.mxu0 0.0
        %474 = vmatpush1.msra.mxu0 %v448
        %475 = vmatprep.subr.mxu0 0.0
        %476 = vmatpush1.msra.mxu0 %v449
        %477 = vmatprep.subr.mxu0 0.0
        %478 = vmatpush1.msra.mxu0 %v450
        %479 = vmatprep.subr.mxu0 0.0
        %480 = vmatpush1.msra.mxu0 %v451
        %481 = vmatprep.subr.mxu0 0.0
        %482 = vmatpush1.msra.mxu0 %v452
        %483 = vmatprep.subr.mxu0 0.0
        %484 = vmatpush1.msra.mxu0 %v453
        %485 = vmatprep.subr.mxu0 0.0
        %486 = vmatpush1.msra.mxu0 %v454
        %487 = vmatprep.subr.mxu0 0.0
        %488 = vmatpush1.msra.mxu0 %v455
        %489 = vmatprep.subr.mxu0 0.0
        %490 = vmatpush1.msra.mxu0 %v456
        %491 = vmatprep.subr.mxu0 0.0
        %492 = vmatpush1.msra.mxu0 %v457
        %493 = vmatprep.subr.mxu0 0.0
        %494 = vmatpush1.msra.mxu0 %v458
        %495 = vmatprep.subr.mxu0 0.0
        %496 = vmatpush1.msra.mxu0 %v459
        %497 = vmatprep.subr.mxu0 0.0
        %498 = vmatpush1.msra.mxu0 %v460
        %499 = vmatprep.subr.mxu0 0.0
        %500 = vmatpush1.msra.mxu0 %v461
        %501 = vmatprep.subr.mxu0 0.0
        %502 = vmatpush1.msra.mxu0 0.0
        %503 = vmatprep.subr.mxu0 0.0
        %504 = vmatpush1.msra.mxu0 0.0
        %505 = vmatprep.subr.mxu0 0.0
        %506 = vmatpush1.msra.mxu0 0.0
        %507 = vmatprep.subr.mxu0 0.0
        %508 = vmatpush1.msra.mxu0 0.0
        %509 = vmatprep.subr.mxu0 0.0
        %510 = vmatpush1.msra.mxu0 0.0
        %511 = vmatprep.subr.mxu0 0.0
        %512 = vmatpush1.msra.mxu0 0.0
        %513 = vmatprep.subr.mxu0 0.0
        %514 = vmatpush1.msra.mxu0 0.0
        %515 = vmatprep.subr.mxu0 0.0
        %516 = vmatpush1.msra.mxu0 0.0
        %517 = vmatprep.subr.mxu0 0.0
        %518 = vmatpush1.msra.mxu0 0.0
        %519 = vmatprep.subr.mxu0 0.0
        %520 = vmatpush1.msra.mxu0 0.0
        %521 = vmatprep.subr.mxu0 0.0
        %522 = vmatpush1.msra.mxu0 0.0
        %523 = vmatprep.subr.mxu0 0.0
        %524 = vmatpush1.msra.mxu0 0.0
        %525 = vmatprep.subr.mxu0 0.0
        %526 = vmatpush1.msra.mxu0 0.0
        %527 = vmatprep.subr.mxu0 0.0
        %528 = vmatpush1.msra.mxu0 0.0
        %529 = vmatprep.subr.mxu0 0.0
        %530 = vmatpush1.msra.mxu0 0.0
        %531 = vmatprep.subr.mxu0 0.0
        %532 = vmatpush1.msra.mxu0 0.0
        %533 = vmatprep.mubr.f32.mxu0 0.0
        %534 = vmatmul.mubr.f32.gmra.mrb[0].mxu0 %v445
        %v535 = vpop.f32.mrb[0].mxu0
        %v536 = vadd.f32 %v467, %v535
        %v537 = vpop.f32.mrb[0].mxu0
        %538 = vdwg.mxu0
        %v539 = vmax.f32 %v536, 0.0
        %v540 = vld [vmem:[%s5] sm:$0x1]
        %v542 = vlaneseq
        %v543 = vshrl.u32 %v542, 7
        %v544 = vsub.s32 0, %v543
        %v545 = vrot.slane %v540, %v544
        %v547 = vmul.f32 %v539, %v545
        %548 = vadd.xlane.f32.xlu0 %v547
        %v549 = vpop.xlane.xlu0 %548
        %v550 = vld [vmem:[%s6] sm:$0x1]
        %v552 = vlaneseq
        %v553 = vshrl.u32 %v552, 7
        %v554 = vsub.s32 0, %v553
        %v555 = vrot.slane %v550, %v554
        %v557 = vmul.f32 %v351, %v555
        %558 = vadd.xlane.f32.xlu0 %v557
        %v559 = vpop.xlane.xlu0 %558
        %v560 = vadd.f32 %v549, %v559
        %s561 = sld [smem:[#allocation2]]
        %v562 = vstv %s561
        %v563 = vadd.f32 %v560, %v562
        %vm564 = vcmask 7168
        %565 = vst.msk [vmem:[%s350] sm:$0xff] %vm564, %v563
        %p566 = scmp.lt.s32.totalorder %s24, 1
        %s567 = scalar_select %p566, %s24, 1
        %s568 = smul.addr %s567, 8
        %s569 = scalar_lea.vmem %s8, %s568
        // Predicated region
        $region65: #{tpu_custom_call.1} parent=51 // pred_check
          %p570 = pneg %p215
        $region66: #{tpu_custom_call.1} parent=51 // pred_check_branch
          %572 = sbr.rel (%p570) target = $region68
        $region67: #{tpu_custom_call.1} parent=51 // pred_region
          _
        $region68: #{tpu_custom_call.1} parent=51 // pred_fallthru
          _
      $region52: #{tpu_custom_call.1} parent=5 // pred_fallthru
        _
      %p573 = scmp.le.s32.totalorder 2, %s19
      // Predicated region
      $region69: #{tpu_custom_call.1} parent=5 // pred_check
        %p574 = pneg %p573
      $region70: #{tpu_custom_call.1} parent=5 // pred_check_branch
        %576 = sbr.rel (%p574) target = $region72
      $region71: #{tpu_custom_call.1} parent=5 // pred_region
        %s577 = ssub.s32 %s19, 2
        // Predicated region
        $region73: #{tpu_custom_call.1} parent=71 // pred_check
          %p578 = pneg %p221
        $region74: #{tpu_custom_call.1} parent=71 // pred_check_branch
          %580 = sbr.rel (%p578) target = $region76
        $region75: #{tpu_custom_call.1} parent=71 // pred_region
          %p581 = scmp.lt.s32.totalorder %s25, 1
          %s582 = scalar_select %p581, %s25, 1
          %s583 = smul.addr %s582, 8
          %s584 = scalar_lea.vmem %s8, %s583
        $region76: #{tpu_custom_call.1} parent=71 // pred_fallthru
          _
      $region72: #{tpu_custom_call.1} parent=5 // pred_fallthru
        _
    $region6: #{tpu_custom_call.1} parent=1 // loop_footer
      %s23 = sadd.s32 1, %s19
    $region7: #{tpu_custom_call.1} parent=1 // loop_footer_branch
      %18 = sbr.rel target = $region3
    $region8: #{tpu_custom_call.1} parent=1 // loop_exit
      _
    %585 = vsyncpa [#allocation4], 1
    %s586 = scalar_lea.sflag [#allocation4], 1
    %587 = vsyncpa %s586, 1
    %588 = vsyncpa [#allocation6], 1

</llo_original>
